<compile_context>
chip_gen: v5e
topology: v5e:2x2
jax: 0.10.0
libtpu: 0.0.40
codegen_flags: <defaults>
</compile_context>

<pallas_src>
import functools

import jax
import jax.numpy as jnp
from jax.experimental import pallas as pl
from jax.experimental.pallas import tpu as pltpu


def _round_up(x, m):
    return ((x + m - 1) // m) * m


def _actor_kernel(x_ref,
                  w1_ref, w2_ref, w3_ref, wm_ref,
                  vec_ref, bm_ref,
                  o_ref,
                  *, eps, neg_slope):
    f32 = jnp.float32
    bf16 = jnp.bfloat16

    def layer(h, w_ref, r):
        # vec_ref rows: [b, gamma, beta] for this layer (static row indices).
        b = vec_ref[r, :]
        g = vec_ref[r + 1, :]
        be = vec_ref[r + 2, :]
        # Linear: bf16 operands, single MXU pass, f32 accumulate.
        h = jnp.dot(h.astype(bf16), w_ref[...], preferred_element_type=f32)
        h = h + b
        # nn.LayerNorm over the feature axis: two-pass (centered) biased
        # variance, eps inside the sqrt, rsqrt on the EUP.
        mean = jnp.mean(h, axis=-1, keepdims=True)
        d = h - mean
        var = jnp.mean(d * d, axis=-1, keepdims=True)
        h = d * jax.lax.rsqrt(var + eps)
        h = h * g + be
        # LeakyReLU (default negative_slope = 0.01): mul + max.
        return jnp.maximum(h, neg_slope * h)

    h = x_ref[...].astype(f32)
    h = layer(h, w1_ref, 0)
    h = layer(h, w2_ref, 3)
    h = layer(h, w3_ref, 6)

    # Final mu layer (lane-padded to 128 output columns) + tanh.
    mu = jnp.dot(h.astype(bf16), wm_ref[...], preferred_element_type=f32)
    mu = mu + bm_ref[...]
    o_ref[...] = jnp.tanh(mu).astype(o_ref.dtype)


def actor_forward(x, params, *, eps=1e-5, neg_slope=0.01, max_block_b=1024):
    """Fused Actor forward.  x: (B, num_inputs).  Returns (B, action_space)."""
    B, num_inputs = x.shape
    (w1, b1, g1, be1), (w2, b2, g2, be2), (w3, b3, g3, be3) = params["layers"]
    wm, bm = params["mu"]
    H = w1.shape[1]
    A = wm.shape[1]
    Np = _round_up(A, 128)            # lane-dense output width

    bf16 = jnp.bfloat16
    f32 = jnp.float32

    # bf16 weights: single MXU pass, half the resident-weight VMEM/DMA bytes.
    w1b = w1.astype(bf16)
    w2b = w2.astype(bf16)
    w3b = w3.astype(bf16)
    wmb = jnp.zeros((H, Np), bf16).at[:, :A].set(wm.astype(bf16))
    bmp = jnp.zeros((1, Np), f32).at[0, :A].set(bm.astype(f32))

    # Stack per-layer bias / gamma / beta into one (9, H) f32 operand.
    vec = jnp.stack([b1, g1, be1, b2, g2, be2, b3, g3, be3]).astype(f32)

    # Batch tiling: sublane-aligned, and >= 2 grid steps when B allows so both
    # v7x TensorCores get work; pad B instead of asserting divisibility.
    sublane = 8
    Bp0 = _round_up(B, sublane)
    half = _round_up(pl.cdiv(Bp0, 2), sublane)
    block_b = max(sublane, min(max_block_b, half))
    Bp = _round_up(Bp0, block_b)
    if Bp != B:
        x = jnp.pad(x, ((0, Bp - B), (0, 0)))

    def const_spec(shape):
        # Constant index_map -> operand stays VMEM-resident across grid steps.
        return pl.BlockSpec(shape, lambda i: (0, 0))

    kernel = functools.partial(_actor_kernel, eps=eps, neg_slope=neg_slope)

    # Advisory cost hint for the XLA scheduler.
    flops = int(2 * Bp * (num_inputs * H + 2 * H * H + H * Np) + 14 * Bp * H)
    transcendentals = int(Bp * (3 + Np))                 # rsqrt per layer + tanh
    bytes_accessed = int(4 * Bp * (num_inputs + Np)
                         + 2 * (num_inputs * H + 2 * H * H + H * Np)
                         + 4 * (9 * H + Np))

    out = pl.pallas_call(
        kernel,
        out_shape=jax.ShapeDtypeStruct((Bp, Np), x.dtype),
        grid_spec=pltpu.PrefetchScalarGridSpec(
            num_scalar_prefetch=0,
            grid=(Bp // block_b,),
            in_specs=[
                pl.BlockSpec((block_b, num_inputs), lambda i: (i, 0)),  # x tile
                const_spec((num_inputs, H)),     # w1 (bf16)
                const_spec((H, H)),              # w2 (bf16)
                const_spec((H, H)),              # w3 (bf16)
                const_spec((H, Np)),             # wm padded (bf16)
                const_spec((9, H)),              # stacked b/gamma/beta (f32)
                const_spec((1, Np)),             # bm padded (f32)
            ],
            out_specs=pl.BlockSpec((block_b, Np), lambda i: (i, 0)),
        ),
        compiler_params=pltpu.CompilerParams(
            dimension_semantics=("parallel",)),
        cost_estimate=pl.CostEstimate(flops=flops,
                                      transcendentals=transcendentals,
                                      bytes_accessed=bytes_accessed),
    )(x, w1b, w2b, w3b, wmb, vec, bmp)

    return out[:B, :A]


def actor_ref(x, params, eps=1e-5, neg_slope=0.01):
    """Pure-JAX f32 reference mirroring the PyTorch Actor.forward."""
    h = x.astype(jnp.float32)
    for (w, b, g, be) in params["layers"]:
        h = jnp.dot(h, w.astype(jnp.float32)) + b
        mean = jnp.mean(h, axis=-1, keepdims=True)
        var = jnp.mean(jnp.square(h - mean), axis=-1, keepdims=True)
        h = (h - mean) / jnp.sqrt(var + eps)
        h = h * g + be
        h = jnp.where(h >= 0, h, neg_slope * h)
    wm, bm = params["mu"]
    mu = jnp.dot(h, wm.astype(jnp.float32)) + bm
    return jnp.tanh(mu)


if __name__ == "__main__":
    key = jax.random.PRNGKey(0)
    ks = jax.random.split(key, 9)

    # Small shapes consistent with the module; hidden=128 keeps lanes dense.
    B, num_inputs, hidden_size, action_space = 16, 8, 128, 4

    def linear_init(kw, kb, fan_in, fan_out, scale=1.0):
        bound = 1.0 / (fan_in ** 0.5)          # PyTorch nn.Linear default init
        w = jax.random.uniform(kw, (fan_in, fan_out), jnp.float32, -bound, bound) * scale
        b = jax.random.uniform(kb, (fan_out,), jnp.float32, -bound, bound) * scale
        return w, b

    w1, b1 = linear_init(ks[0], ks[1], num_inputs, hidden_size)
    w2, b2 = linear_init(ks[2], ks[3], hidden_size, hidden_size)
    w3, b3 = linear_init(ks[4], ks[5], hidden_size, hidden_size)
    wm, bm = linear_init(ks[6], ks[7], hidden_size, action_space, scale=0.1)  # mu *= 0.1

    gamma = jnp.ones((hidden_size,), jnp.float32)    # nn.LayerNorm default affine
    beta = jnp.zeros((hidden_size,), jnp.float32)

    params = {
        "layers": [(w1, b1, gamma, beta),
                   (w2, b2, gamma, beta),
                   (w3, b3, gamma, beta)],
        "mu": (wm, bm),
    }

    x = jax.random.normal(ks[8], (B, num_inputs), dtype=jnp.float32)

    out = actor_forward(x, params)
    out = jax.block_until_ready(out)

    ref = actor_ref(x, params)
    assert out.shape == (B, action_space)
    # bf16 MXU operands vs. the f32 reference -> loose-but-meaningful tolerance.
    assert jnp.allclose(out, ref, atol=2e-2, rtol=2e-2), \
        float(jnp.max(jnp.abs(out - ref)))

    print("KERNEL_OK")
</pallas_src>

<mosaic_0001>
module attributes {stable_mosaic.version = 11 : i64} {
  func.func @_actor_kernel(%arg0: i32, %arg1: memref<8x8xf32, #tpu.memory_space<vmem>>, %arg2: memref<8x128xbf16, #tpu.memory_space<vmem>>, %arg3: memref<128x128xbf16, #tpu.memory_space<vmem>>, %arg4: memref<128x128xbf16, #tpu.memory_space<vmem>>, %arg5: memref<128x128xbf16, #tpu.memory_space<vmem>>, %arg6: memref<9x128xf32, #tpu.memory_space<vmem>>, %arg7: memref<1x128xf32, #tpu.memory_space<vmem>>, %arg8: memref<8x128xf32, #tpu.memory_space<vmem>>) attributes {dimension_semantics = [#tpu.dimension_semantics<parallel>], iteration_bounds = array<i64: 2>, scalar_prefetch = 0 : i64, scratch_operands = 0 : i64, tpu.core_type = #tpu.core_type<tc>, window_params = [{transform_indices = @transform_0, window_bounds = array<i64: 8, 8>}, {pipeline_mode = #tpu.pipeline_mode<synchronous>, transform_indices = @transform_1, window_bounds = array<i64: 8, 128>}, {pipeline_mode = #tpu.pipeline_mode<synchronous>, transform_indices = @transform_2, window_bounds = array<i64: 128, 128>}, {pipeline_mode = #tpu.pipeline_mode<synchronous>, transform_indices = @transform_3, window_bounds = array<i64: 128, 128>}, {pipeline_mode = #tpu.pipeline_mode<synchronous>, transform_indices = @transform_4, window_bounds = array<i64: 128, 128>}, {pipeline_mode = #tpu.pipeline_mode<synchronous>, transform_indices = @transform_5, window_bounds = array<i64: 9, 128>}, {pipeline_mode = #tpu.pipeline_mode<synchronous>, transform_indices = @transform_6, window_bounds = array<i64: 1, 128>}, {transform_indices = @transform_7, window_bounds = array<i64: 8, 128>}]} {
    %c0 = arith.constant 0 : index
    %c0_0 = arith.constant 0 : index
    %0 = vector.load %arg1[%c0, %c0_0] : memref<8x8xf32, #tpu.memory_space<vmem>>, vector<8x8xf32>
    %c0_1 = arith.constant 0 : index
    %c0_2 = arith.constant 0 : index
    %1 = vector.load %arg6[%c0_1, %c0_2] : memref<9x128xf32, #tpu.memory_space<vmem>>, vector<1x128xf32>
    %2 = vector.shape_cast %1 : vector<1x128xf32> to vector<128xf32>
    %c1 = arith.constant 1 : index
    %c0_3 = arith.constant 0 : index
    %3 = vector.load %arg6[%c1, %c0_3] : memref<9x128xf32, #tpu.memory_space<vmem>>, vector<1x128xf32>
    %4 = vector.shape_cast %3 : vector<1x128xf32> to vector<128xf32>
    %c2 = arith.constant 2 : index
    %c0_4 = arith.constant 0 : index
    %5 = vector.load %arg6[%c2, %c0_4] : memref<9x128xf32, #tpu.memory_space<vmem>>, vector<1x128xf32>
    %6 = vector.shape_cast %5 : vector<1x128xf32> to vector<128xf32>
    %7 = arith.truncf %0 : vector<8x8xf32> to vector<8x8xbf16>
    %c0_5 = arith.constant 0 : index
    %c0_6 = arith.constant 0 : index
    %8 = vector.load %arg2[%c0_5, %c0_6] : memref<8x128xbf16, #tpu.memory_space<vmem>>, vector<8x128xbf16>
    %cst = arith.constant dense<0.000000e+00> : vector<8x128xf32>
    %9 = tpu.matmul %7, %8, %cst {dimension_numbers = #tpu.dot_dimension_numbers<[1], [0], [0], [1], [0, 0, 1, 1], [], []>} : vector<8x8xbf16>, vector<8x128xbf16>, vector<8x128xf32> -> vector<8x128xf32>
    %10 = vector.shape_cast %2 : vector<128xf32> to vector<1x128xf32>
    %11 = vector.broadcast %10 : vector<1x128xf32> to vector<8x128xf32>
    %12 = arith.addf %9, %11 : vector<8x128xf32>
    %cst_7 = arith.constant dense<0.000000e+00> : vector<8xf32>
    %13 = vector.multi_reduction <add>, %12, %cst_7 [1] : vector<8x128xf32> to vector<8xf32>
    %14 = vector.shape_cast %13 : vector<8xf32> to vector<8x1xf32>
    %cst_8 = arith.constant 1.280000e+02 : f32
    %15 = vector.broadcast %cst_8 : f32 to vector<8x1xf32>
    %16 = arith.divf %14, %15 : vector<8x1xf32>
    %17 = vector.broadcast %16 : vector<8x1xf32> to vector<8x128xf32>
    %18 = arith.subf %12, %17 : vector<8x128xf32>
    %19 = arith.mulf %18, %18 : vector<8x128xf32>
    %cst_9 = arith.constant dense<0.000000e+00> : vector<8xf32>
    %20 = vector.multi_reduction <add>, %19, %cst_9 [1] : vector<8x128xf32> to vector<8xf32>
    %21 = vector.shape_cast %20 : vector<8xf32> to vector<8x1xf32>
    %cst_10 = arith.constant 1.280000e+02 : f32
    %22 = vector.broadcast %cst_10 : f32 to vector<8x1xf32>
    %23 = arith.divf %21, %22 : vector<8x1xf32>
    %cst_11 = arith.constant 9.99999974E-6 : f32
    %24 = vector.broadcast %cst_11 : f32 to vector<8x1xf32>
    %25 = arith.addf %23, %24 : vector<8x1xf32>
    %26 = math.rsqrt %25 : vector<8x1xf32>
    %27 = vector.broadcast %26 : vector<8x1xf32> to vector<8x128xf32>
    %28 = arith.mulf %18, %27 : vector<8x128xf32>
    %29 = vector.shape_cast %4 : vector<128xf32> to vector<1x128xf32>
    %30 = vector.broadcast %29 : vector<1x128xf32> to vector<8x128xf32>
    %31 = arith.mulf %28, %30 : vector<8x128xf32>
    %32 = vector.shape_cast %6 : vector<128xf32> to vector<1x128xf32>
    %33 = vector.broadcast %32 : vector<1x128xf32> to vector<8x128xf32>
    %34 = arith.addf %31, %33 : vector<8x128xf32>
    %cst_12 = arith.constant 0.00999999977 : f32
    %35 = vector.broadcast %cst_12 : f32 to vector<8x128xf32>
    %36 = arith.mulf %35, %34 : vector<8x128xf32>
    %37 = arith.maximumf %34, %36 : vector<8x128xf32>
    %c3 = arith.constant 3 : index
    %c0_13 = arith.constant 0 : index
    %38 = vector.load %arg6[%c3, %c0_13] : memref<9x128xf32, #tpu.memory_space<vmem>>, vector<1x128xf32>
    %39 = vector.shape_cast %38 : vector<1x128xf32> to vector<128xf32>
    %c4 = arith.constant 4 : index
    %c0_14 = arith.constant 0 : index
    %40 = vector.load %arg6[%c4, %c0_14] : memref<9x128xf32, #tpu.memory_space<vmem>>, vector<1x128xf32>
    %41 = vector.shape_cast %40 : vector<1x128xf32> to vector<128xf32>
    %c5 = arith.constant 5 : index
    %c0_15 = arith.constant 0 : index
    %42 = vector.load %arg6[%c5, %c0_15] : memref<9x128xf32, #tpu.memory_space<vmem>>, vector<1x128xf32>
    %43 = vector.shape_cast %42 : vector<1x128xf32> to vector<128xf32>
    %44 = arith.truncf %37 : vector<8x128xf32> to vector<8x128xbf16>
    %c0_16 = arith.constant 0 : index
    %c0_17 = arith.constant 0 : index
    %45 = vector.load %arg3[%c0_16, %c0_17] : memref<128x128xbf16, #tpu.memory_space<vmem>>, vector<128x128xbf16>
    %cst_18 = arith.constant dense<0.000000e+00> : vector<8x128xf32>
    %46 = tpu.matmul %44, %45, %cst_18 {dimension_numbers = #tpu.dot_dimension_numbers<[1], [0], [0], [1], [0, 0, 1, 1], [], []>} : vector<8x128xbf16>, vector<128x128xbf16>, vector<8x128xf32> -> vector<8x128xf32>
    %47 = vector.shape_cast %39 : vector<128xf32> to vector<1x128xf32>
    %48 = vector.broadcast %47 : vector<1x128xf32> to vector<8x128xf32>
    %49 = arith.addf %46, %48 : vector<8x128xf32>
    %cst_19 = arith.constant dense<0.000000e+00> : vector<8xf32>
    %50 = vector.multi_reduction <add>, %49, %cst_19 [1] : vector<8x128xf32> to vector<8xf32>
    %51 = vector.shape_cast %50 : vector<8xf32> to vector<8x1xf32>
    %cst_20 = arith.constant 1.280000e+02 : f32
    %52 = vector.broadcast %cst_20 : f32 to vector<8x1xf32>
    %53 = arith.divf %51, %52 : vector<8x1xf32>
    %54 = vector.broadcast %53 : vector<8x1xf32> to vector<8x128xf32>
    %55 = arith.subf %49, %54 : vector<8x128xf32>
    %56 = arith.mulf %55, %55 : vector<8x128xf32>
    %cst_21 = arith.constant dense<0.000000e+00> : vector<8xf32>
    %57 = vector.multi_reduction <add>, %56, %cst_21 [1] : vector<8x128xf32> to vector<8xf32>
    %58 = vector.shape_cast %57 : vector<8xf32> to vector<8x1xf32>
    %cst_22 = arith.constant 1.280000e+02 : f32
    %59 = vector.broadcast %cst_22 : f32 to vector<8x1xf32>
    %60 = arith.divf %58, %59 : vector<8x1xf32>
    %cst_23 = arith.constant 9.99999974E-6 : f32
    %61 = vector.broadcast %cst_23 : f32 to vector<8x1xf32>
    %62 = arith.addf %60, %61 : vector<8x1xf32>
    %63 = math.rsqrt %62 : vector<8x1xf32>
    %64 = vector.broadcast %63 : vector<8x1xf32> to vector<8x128xf32>
    %65 = arith.mulf %55, %64 : vector<8x128xf32>
    %66 = vector.shape_cast %41 : vector<128xf32> to vector<1x128xf32>
    %67 = vector.broadcast %66 : vector<1x128xf32> to vector<8x128xf32>
    %68 = arith.mulf %65, %67 : vector<8x128xf32>
    %69 = vector.shape_cast %43 : vector<128xf32> to vector<1x128xf32>
    %70 = vector.broadcast %69 : vector<1x128xf32> to vector<8x128xf32>
    %71 = arith.addf %68, %70 : vector<8x128xf32>
    %cst_24 = arith.constant 0.00999999977 : f32
    %72 = vector.broadcast %cst_24 : f32 to vector<8x128xf32>
    %73 = arith.mulf %72, %71 : vector<8x128xf32>
    %74 = arith.maximumf %71, %73 : vector<8x128xf32>
    %c6 = arith.constant 6 : index
    %c0_25 = arith.constant 0 : index
    %75 = vector.load %arg6[%c6, %c0_25] : memref<9x128xf32, #tpu.memory_space<vmem>>, vector<1x128xf32>
    %76 = vector.shape_cast %75 : vector<1x128xf32> to vector<128xf32>
    %c7 = arith.constant 7 : index
    %c0_26 = arith.constant 0 : index
    %77 = vector.load %arg6[%c7, %c0_26] : memref<9x128xf32, #tpu.memory_space<vmem>>, vector<1x128xf32>
    %78 = vector.shape_cast %77 : vector<1x128xf32> to vector<128xf32>
    %c8 = arith.constant 8 : index
    %c0_27 = arith.constant 0 : index
    %79 = vector.load %arg6[%c8, %c0_27] : memref<9x128xf32, #tpu.memory_space<vmem>>, vector<1x128xf32>
    %80 = vector.shape_cast %79 : vector<1x128xf32> to vector<128xf32>
    %81 = arith.truncf %74 : vector<8x128xf32> to vector<8x128xbf16>
    %c0_28 = arith.constant 0 : index
    %c0_29 = arith.constant 0 : index
    %82 = vector.load %arg4[%c0_28, %c0_29] : memref<128x128xbf16, #tpu.memory_space<vmem>>, vector<128x128xbf16>
    %cst_30 = arith.constant dense<0.000000e+00> : vector<8x128xf32>
    %83 = tpu.matmul %81, %82, %cst_30 {dimension_numbers = #tpu.dot_dimension_numbers<[1], [0], [0], [1], [0, 0, 1, 1], [], []>} : vector<8x128xbf16>, vector<128x128xbf16>, vector<8x128xf32> -> vector<8x128xf32>
    %84 = vector.shape_cast %76 : vector<128xf32> to vector<1x128xf32>
    %85 = vector.broadcast %84 : vector<1x128xf32> to vector<8x128xf32>
    %86 = arith.addf %83, %85 : vector<8x128xf32>
    %cst_31 = arith.constant dense<0.000000e+00> : vector<8xf32>
    %87 = vector.multi_reduction <add>, %86, %cst_31 [1] : vector<8x128xf32> to vector<8xf32>
    %88 = vector.shape_cast %87 : vector<8xf32> to vector<8x1xf32>
    %cst_32 = arith.constant 1.280000e+02 : f32
    %89 = vector.broadcast %cst_32 : f32 to vector<8x1xf32>
    %90 = arith.divf %88, %89 : vector<8x1xf32>
    %91 = vector.broadcast %90 : vector<8x1xf32> to vector<8x128xf32>
    %92 = arith.subf %86, %91 : vector<8x128xf32>
    %93 = arith.mulf %92, %92 : vector<8x128xf32>
    %cst_33 = arith.constant dense<0.000000e+00> : vector<8xf32>
    %94 = vector.multi_reduction <add>, %93, %cst_33 [1] : vector<8x128xf32> to vector<8xf32>
    %95 = vector.shape_cast %94 : vector<8xf32> to vector<8x1xf32>
    %cst_34 = arith.constant 1.280000e+02 : f32
    %96 = vector.broadcast %cst_34 : f32 to vector<8x1xf32>
    %97 = arith.divf %95, %96 : vector<8x1xf32>
    %cst_35 = arith.constant 9.99999974E-6 : f32
    %98 = vector.broadcast %cst_35 : f32 to vector<8x1xf32>
    %99 = arith.addf %97, %98 : vector<8x1xf32>
    %100 = math.rsqrt %99 : vector<8x1xf32>
    %101 = vector.broadcast %100 : vector<8x1xf32> to vector<8x128xf32>
    %102 = arith.mulf %92, %101 : vector<8x128xf32>
    %103 = vector.shape_cast %78 : vector<128xf32> to vector<1x128xf32>
    %104 = vector.broadcast %103 : vector<1x128xf32> to vector<8x128xf32>
    %105 = arith.mulf %102, %104 : vector<8x128xf32>
    %106 = vector.shape_cast %80 : vector<128xf32> to vector<1x128xf32>
    %107 = vector.broadcast %106 : vector<1x128xf32> to vector<8x128xf32>
    %108 = arith.addf %105, %107 : vector<8x128xf32>
    %cst_36 = arith.constant 0.00999999977 : f32
    %109 = vector.broadcast %cst_36 : f32 to vector<8x128xf32>
    %110 = arith.mulf %109, %108 : vector<8x128xf32>
    %111 = arith.maximumf %108, %110 : vector<8x128xf32>
    %112 = arith.truncf %111 : vector<8x128xf32> to vector<8x128xbf16>
    %c0_37 = arith.constant 0 : index
    %c0_38 = arith.constant 0 : index
    %113 = vector.load %arg5[%c0_37, %c0_38] : memref<128x128xbf16, #tpu.memory_space<vmem>>, vector<128x128xbf16>
    %cst_39 = arith.constant dense<0.000000e+00> : vector<8x128xf32>
    %114 = tpu.matmul %112, %113, %cst_39 {dimension_numbers = #tpu.dot_dimension_numbers<[1], [0], [0], [1], [0, 0, 1, 1], [], []>} : vector<8x128xbf16>, vector<128x128xbf16>, vector<8x128xf32> -> vector<8x128xf32>
    %c0_40 = arith.constant 0 : index
    %c0_41 = arith.constant 0 : index
    %115 = vector.load %arg7[%c0_40, %c0_41] : memref<1x128xf32, #tpu.memory_space<vmem>>, vector<1x128xf32>
    %116 = vector.broadcast %115 : vector<1x128xf32> to vector<8x128xf32>
    %117 = arith.addf %114, %116 : vector<8x128xf32>
    %118 = math.tanh %117 : vector<8x128xf32>
    %c0_42 = arith.constant 0 : index
    %c0_43 = arith.constant 0 : index
    %119 = vector.load %arg8[%c0_42, %c0_43] : memref<8x128xf32, #tpu.memory_space<vmem>>, vector<8x128xf32>
    tpu.vector_store %arg8[%c0_42, %c0_43], %118 {strides = array<i32>} : memref<8x128xf32, #tpu.memory_space<vmem>>, vector<8x128xf32>,
    return
  }
  func.func @transform_0(%arg0: i32) -> (i32, i32) {
    %c0_i32 = arith.constant 0 : i32
    %c0_i32_0 = arith.constant 0 : i32
    return %arg0, %c0_i32 : i32, i32
  }
  func.func @transform_1(%arg0: i32) -> (i32, i32) {
    %c0_i32 = arith.constant 0 : i32
    %c0_i32_0 = arith.constant 0 : i32
    %c0_i32_1 = arith.constant 0 : i32
    return %c0_i32, %c0_i32_0 : i32, i32
  }
  func.func @transform_2(%arg0: i32) -> (i32, i32) {
    %c0_i32 = arith.constant 0 : i32
    %c0_i32_0 = arith.constant 0 : i32
    %c0_i32_1 = arith.constant 0 : i32
    return %c0_i32, %c0_i32_0 : i32, i32
  }
  func.func @transform_3(%arg0: i32) -> (i32, i32) {
    %c0_i32 = arith.constant 0 : i32
    %c0_i32_0 = arith.constant 0 : i32
    %c0_i32_1 = arith.constant 0 : i32
    return %c0_i32, %c0_i32_0 : i32, i32
  }
  func.func @transform_4(%arg0: i32) -> (i32, i32) {
    %c0_i32 = arith.constant 0 : i32
    %c0_i32_0 = arith.constant 0 : i32
    %c0_i32_1 = arith.constant 0 : i32
    return %c0_i32, %c0_i32_0 : i32, i32
  }
  func.func @transform_5(%arg0: i32) -> (i32, i32) {
    %c0_i32 = arith.constant 0 : i32
    %c0_i32_0 = arith.constant 0 : i32
    %c0_i32_1 = arith.constant 0 : i32
    return %c0_i32, %c0_i32_0 : i32, i32
  }
  func.func @transform_6(%arg0: i32) -> (i32, i32) {
    %c0_i32 = arith.constant 0 : i32
    %c0_i32_0 = arith.constant 0 : i32
    %c0_i32_1 = arith.constant 0 : i32
    return %c0_i32, %c0_i32_0 : i32, i32
  }
  func.func @transform_7(%arg0: i32) -> (i32, i32) {
    %c0_i32 = arith.constant 0 : i32
    %c0_i32_0 = arith.constant 0 : i32
    return %arg0, %c0_i32 : i32, i32
  }
}

</mosaic_0001>

<llo_original>
// kernel: tpu_custom_call.1
$region0: #{tpu_custom_call.1}
  #allocation0 [shape = 'u32[]', space=smem, size = 0x4, offset = 0x4, fixed_abs, tag = 'smem constant byte address 0x4 - core index']
  #allocation1 [shape = 'u32[72,128]{1,0:T(1,128)}', space=vmem, size = 0x9000, scoped, tag = 'internal scratch']
  %s0 = inlined_call_operand.vmem [shape: f32[16,8], index: 0, kind: input, shape index: {}]
  %s1 = inlined_call_operand.vmem [shape: bf16[8,128], index: 1, kind: input, shape index: {}]
  %s2 = inlined_call_operand.hbm [shape: bf16[128,128], index: 2, kind: input, shape index: {}]
  %s3 = inlined_call_operand.hbm [shape: bf16[128,128], index: 3, kind: input, shape index: {}]
  %s4 = inlined_call_operand.hbm [shape: bf16[128,128], index: 4, kind: input, shape index: {}]
  %s5 = inlined_call_operand.vmem [shape: f32[9,128], index: 5, kind: input, shape index: {}]
  %s6 = inlined_call_operand.vmem [shape: f32[1,128], index: 6, kind: input, shape index: {}]
  %s7 = inlined_call_operand.hbm [shape: f32[16,128], index: 7, kind: output, shape index: {}]
  %s8 = sld [smem:[#allocation0]]
  $region73: #{tpu_custom_call.1} parent=0
    _
  %s10 = ssub.s32 1, %s8
  %s11 = scalar_select 0, %s10, %s8
  $region1: #{tpu_custom_call.1} parent=0
    #allocation2 [shape = 'u8[32768]{0}', space=vmem, size = 0x8000, scoped, tag = 'input window, operand 2, single buffered']
    #allocation3 [shape = 's32[2]{0}', space=sflag, size = 0x8, scoped, tag = 'scoped memory for tpu_custom_call.1']
    #allocation4 [shape = 's32[2]{0}', space=sflag, size = 0x8, scoped, tag = 'scoped memory for tpu_custom_call.1']
    #allocation5 [shape = 'u8[32768]{0}', space=vmem, size = 0x8000, scoped, tag = 'input window, operand 3, single buffered']
    #allocation6 [shape = 's32[1]{0}', space=sflag, size = 0x4, scoped, tag = 'scoped memory for tpu_custom_call.1']
    #allocation7 [shape = 'u8[32768]{0}', space=vmem, size = 0x8000, scoped, tag = 'input window, operand 4, single buffered']
    #allocation8 [shape = 'u8[8192]{0}', space=vmem, size = 0x2000, scoped, tag = 'output window, operand 0']
    %12 = vsyncpa [#allocation3], 0
    %13 = vsyncpa [#allocation6], 0
    %14 = vsyncpa [#allocation4], 0
    %s15 = scalar_lea.sflag [#allocation4], 1
    %16 = vsyncpa %s15, 0
    loop: start=0, step=1, limit=4
    $region2: #{tpu_custom_call.1} parent=1 // loop_pre_header
      _
    $region3: #{tpu_custom_call.1} parent=1 // loop_header
      %s18 = sphi 0, %s22
      %p19 = scmp.ge.s32.totalorder %s18, 4
      %s28 = sphi 0, %s30
      %s31 = sphi 0, %s28
      %s32 = sphi 0, %s31
      %s48 = sphi 0, %s32
      %s52 = sphi 0, %s52
      %s54 = sphi 0, %s52
      %s55 = sphi 0, %s54
      %s69 = sphi 0, %s55
      %s73 = sphi 0, %s73
      %s75 = sphi 0, %s73
      %s76 = sphi 0, %s75
      %s90 = sphi 0, %s76
      %s94 = sphi 0, %s94
      %s96 = sphi 0, %s94
      %s97 = sphi 0, %s96
      %s111 = sphi 0, %s97
      %s115 = sphi 0, %s115
      %s117 = sphi 0, %s115
      %s118 = sphi 0, %s117
      %s132 = sphi 0, %s118
      %s136 = sphi 0, %s136
      %s138 = sphi 0, %s136
      %s139 = sphi 0, %s138
      %s153 = sphi 0, %s139
      %s157 = sphi 0, %s157
      %s159 = sphi 0, %s157
      %s160 = sphi 0, %s159
      %s174 = sphi 0, %s160
      %s180 = sphi 0, %s182
      %s183 = sphi 0, %s180
      %s184 = sphi 0, %s183
      %s200 = sphi 0, %s184
    $region4: #{tpu_custom_call.1} parent=1 // loop_header_branch
      %21 = sbr.rel (%p19) target = $region8
    $region5: #{tpu_custom_call.1} parent=1 // loop_body
      %s23 = ssub.s32 %s18, 1
      %s24 = ssub.s32 %s18, 2
      %s25 = sadd.s32 %s18, 1
      %s26 = ssub.s32 %s18, %s25
      %p27 = scmp.eq.s32.totalorder %s26, 0
      %s29 = sadd.s32 %s28, 1
      %s30 = scalar_select %p27, %s28, %s29
      %p33 = pneg %p27
      %p34 = scmp.eq.s32.totalorder %s18, 1
      %p35 = por %p33, %p34
      %p36 = scmp.ne.s32.totalorder %s28, %s31
      %p37 = scmp.eq.s32.totalorder %s18, 0
      %p38 = por %p36, %p37
      %p39 = scmp.ne.s32.totalorder %s28, %s31
      %p40 = scmp.eq.s32.totalorder %s23, 1
      %p41 = por %p39, %p40
      %p42 = scmp.ne.s32.totalorder %s31, %s32
      %p43 = scmp.eq.s32.totalorder %s23, 0
      %p44 = por %p42, %p43
      %p45 = scmp.ne.s32.totalorder %s31, %s32
      %p46 = scmp.eq.s32.totalorder %s24, 1
      %p47 = por %p45, %p46
      %p49 = scmp.ne.s32.totalorder %s32, %s48
      %p50 = scmp.eq.s32.totalorder %s24, 0
      %p51 = por %p49, %p50
      %s53 = sadd.s32 %s52, 1
      %p56 = scmp.eq.s32.totalorder %s18, 1
      %p57 = scmp.ne.s32.totalorder %s52, %s54
      %p58 = scmp.eq.s32.totalorder %s18, 0
      %p59 = por %p57, %p58
      %p60 = scmp.ne.s32.totalorder %s52, %s54
      %p61 = scmp.eq.s32.totalorder %s23, 1
      %p62 = por %p60, %p61
      %p63 = scmp.ne.s32.totalorder %s54, %s55
      %p64 = scmp.eq.s32.totalorder %s23, 0
      %p65 = por %p63, %p64
      %p66 = scmp.ne.s32.totalorder %s54, %s55
      %p67 = scmp.eq.s32.totalorder %s24, 1
      %p68 = por %p66, %p67
      %p70 = scmp.ne.s32.totalorder %s55, %s69
      %p71 = scmp.eq.s32.totalorder %s24, 0
      %p72 = por %p70, %p71
      %s74 = sadd.s32 %s73, 1
      %p77 = scmp.eq.s32.totalorder %s18, 1
      %p78 = scmp.ne.s32.totalorder %s73, %s75
      %p79 = scmp.eq.s32.totalorder %s18, 0
      %p80 = por %p78, %p79
      %p81 = scmp.ne.s32.totalorder %s73, %s75
      %p82 = scmp.eq.s32.totalorder %s23, 1
      %p83 = por %p81, %p82
      %p84 = scmp.ne.s32.totalorder %s75, %s76
      %p85 = scmp.eq.s32.totalorder %s23, 0
      %p86 = por %p84, %p85
      %p87 = scmp.ne.s32.totalorder %s75, %s76
      %p88 = scmp.eq.s32.totalorder %s24, 1
      %p89 = por %p87, %p88
      %p91 = scmp.ne.s32.totalorder %s76, %s90
      %p92 = scmp.eq.s32.totalorder %s24, 0
      %p93 = por %p91, %p92
      %s95 = sadd.s32 %s94, 1
      %p98 = scmp.eq.s32.totalorder %s18, 1
      %p99 = scmp.ne.s32.totalorder %s94, %s96
      %p100 = scmp.eq.s32.totalorder %s18, 0
      %p101 = por %p99, %p100
      %p102 = scmp.ne.s32.totalorder %s94, %s96
      %p103 = scmp.eq.s32.totalorder %s23, 1
      %p104 = por %p102, %p103
      %p105 = scmp.ne.s32.totalorder %s96, %s97
      %p106 = scmp.eq.s32.totalorder %s23, 0
      %p107 = por %p105, %p106
      %p108 = scmp.ne.s32.totalorder %s96, %s97
      %p109 = scmp.eq.s32.totalorder %s24, 1
      %p110 = por %p108, %p109
      %p112 = scmp.ne.s32.totalorder %s97, %s111
      %p113 = scmp.eq.s32.totalorder %s24, 0
      %p114 = por %p112, %p113
      %s116 = sadd.s32 %s115, 1
      %p119 = scmp.eq.s32.totalorder %s18, 1
      %p120 = scmp.ne.s32.totalorder %s115, %s117
      %p121 = scmp.eq.s32.totalorder %s18, 0
      %p122 = por %p120, %p121
      %p123 = scmp.ne.s32.totalorder %s115, %s117
      %p124 = scmp.eq.s32.totalorder %s23, 1
      %p125 = por %p123, %p124
      %p126 = scmp.ne.s32.totalorder %s117, %s118
      %p127 = scmp.eq.s32.totalorder %s23, 0
      %p128 = por %p126, %p127
      %p129 = scmp.ne.s32.totalorder %s117, %s118
      %p130 = scmp.eq.s32.totalorder %s24, 1
      %p131 = por %p129, %p130
      %p133 = scmp.ne.s32.totalorder %s118, %s132
      %p134 = scmp.eq.s32.totalorder %s24, 0
      %p135 = por %p133, %p134
      %s137 = sadd.s32 %s136, 1
      %p140 = scmp.eq.s32.totalorder %s18, 1
      %p141 = scmp.ne.s32.totalorder %s136, %s138
      %p142 = scmp.eq.s32.totalorder %s18, 0
      %p143 = por %p141, %p142
      %p144 = scmp.ne.s32.totalorder %s136, %s138
      %p145 = scmp.eq.s32.totalorder %s23, 1
      %p146 = por %p144, %p145
      %p147 = scmp.ne.s32.totalorder %s138, %s139
      %p148 = scmp.eq.s32.totalorder %s23, 0
      %p149 = por %p147, %p148
      %p150 = scmp.ne.s32.totalorder %s138, %s139
      %p151 = scmp.eq.s32.totalorder %s24, 1
      %p152 = por %p150, %p151
      %p154 = scmp.ne.s32.totalorder %s139, %s153
      %p155 = scmp.eq.s32.totalorder %s24, 0
      %p156 = por %p154, %p155
      %s158 = sadd.s32 %s157, 1
      %p161 = scmp.eq.s32.totalorder %s18, 1
      %p162 = scmp.ne.s32.totalorder %s157, %s159
      %p163 = scmp.eq.s32.totalorder %s18, 0
      %p164 = por %p162, %p163
      %p165 = scmp.ne.s32.totalorder %s157, %s159
      %p166 = scmp.eq.s32.totalorder %s23, 1
      %p167 = por %p165, %p166
      %p168 = scmp.ne.s32.totalorder %s159, %s160
      %p169 = scmp.eq.s32.totalorder %s23, 0
      %p170 = por %p168, %p169
      %p171 = scmp.ne.s32.totalorder %s159, %s160
      %p172 = scmp.eq.s32.totalorder %s24, 1
      %p173 = por %p171, %p172
      %p175 = scmp.ne.s32.totalorder %s160, %s174
      %p176 = scmp.eq.s32.totalorder %s24, 0
      %p177 = por %p175, %p176
      %s178 = ssub.s32 %s18, %s25
      %p179 = scmp.eq.s32.totalorder %s178, 0
      %s181 = sadd.s32 %s180, 1
      %s182 = scalar_select %p179, %s180, %s181
      %p185 = pneg %p179
      %p186 = scmp.eq.s32.totalorder %s18, 1
      %p187 = por %p185, %p186
      %p188 = scmp.ne.s32.totalorder %s180, %s183
      %p189 = scmp.eq.s32.totalorder %s18, 0
      %p190 = por %p188, %p189
      %p191 = scmp.ne.s32.totalorder %s180, %s183
      %p192 = scmp.eq.s32.totalorder %s23, 1
      %p193 = por %p191, %p192
      %p194 = scmp.ne.s32.totalorder %s183, %s184
      %p195 = scmp.eq.s32.totalorder %s23, 0
      %p196 = por %p194, %p195
      %p197 = scmp.ne.s32.totalorder %s183, %s184
      %p198 = scmp.eq.s32.totalorder %s24, 1
      %p199 = por %p197, %p198
      %p201 = scmp.ne.s32.totalorder %s184, %s200
      %p202 = scmp.eq.s32.totalorder %s24, 0
      %p203 = por %p201, %p202
      %p204 = scmp.le.s32.totalorder 1, %s18
      %p205 = scmp.lt.s32.totalorder %s18, 3
      %p206 = pnand %p204, %p205
      %p207 = pneg %p206
      // Predicated region
      $region9: #{tpu_custom_call.1} parent=5 // pred_check
        _
      $region10: #{tpu_custom_call.1} parent=5 // pred_check_branch
        %209 = sbr.rel (%p206) target = $region12
      $region11: #{tpu_custom_call.1} parent=5 // pred_region
        %s210 = ssub.s32 %s18, 1
        // Predicated region
        $region13: #{tpu_custom_call.1} parent=11 // pred_check
          %p211 = pneg %p65
        $region14: #{tpu_custom_call.1} parent=11 // pred_check_branch
          %213 = sbr.rel (%p211) target = $region16
        $region15: #{tpu_custom_call.1} parent=11 // pred_region
          _
        $region16: #{tpu_custom_call.1} parent=11 // pred_fallthru
          _
        // Predicated region
        $region17: #{tpu_custom_call.1} parent=11 // pred_check
          %p214 = pneg %p86
        $region18: #{tpu_custom_call.1} parent=11 // pred_check_branch
          %216 = sbr.rel (%p214) target = $region20
        $region19: #{tpu_custom_call.1} parent=11 // pred_region
          %218 = vsyncadd [#allocation3], 0
          %s219 = sshll.u32 %s2, 4
          %s220 = int_to_ptr.hbm [resolvable:$true] %s219
          %s221 = sshll.u32 [#allocation2], 4
          %s222 = int_to_ptr.vmem [resolvable:$true] %s221
          %227 = dma.hbm_to_vmem [thread:$0]  %s220, 1024, %s222, [#allocation3], 64, 64, 4
        $region20: #{tpu_custom_call.1} parent=11 // pred_fallthru
          _
        // Predicated region
        $region21: #{tpu_custom_call.1} parent=11 // pred_check
          %p228 = pneg %p107
        $region22: #{tpu_custom_call.1} parent=11 // pred_check_branch
          %230 = sbr.rel (%p228) target = $region24
        $region23: #{tpu_custom_call.1} parent=11 // pred_region
          %232 = vsyncadd [#allocation6], 0
          %s233 = sshll.u32 %s3, 4
          %s234 = int_to_ptr.hbm [resolvable:$true] %s233
          %s235 = sshll.u32 [#allocation5], 4
          %s236 = int_to_ptr.vmem [resolvable:$true] %s235
          %241 = dma.hbm_to_vmem [thread:$0]  %s234, 1024, %s236, [#allocation6], 64, 64, 4
        $region24: #{tpu_custom_call.1} parent=11 // pred_fallthru
          _
        // Predicated region
        $region25: #{tpu_custom_call.1} parent=11 // pred_check
          %p242 = pneg %p128
        $region26: #{tpu_custom_call.1} parent=11 // pred_check_branch
          %244 = sbr.rel (%p242) target = $region28
        $region27: #{tpu_custom_call.1} parent=11 // pred_region
          %246 = vsyncadd [#allocation6], 0
          %s247 = sshll.u32 %s4, 4
          %s248 = int_to_ptr.hbm [resolvable:$true] %s247
          %s249 = sshll.u32 [#allocation7], 4
          %s250 = int_to_ptr.vmem [resolvable:$true] %s249
          %255 = dma.hbm_to_vmem [thread:$0]  %s248, 1024, %s250, [#allocation6], 64, 64, 4
        $region28: #{tpu_custom_call.1} parent=11 // pred_fallthru
          _
        // Predicated region
        $region29: #{tpu_custom_call.1} parent=11 // pred_check
          %p256 = pneg %p149
        $region30: #{tpu_custom_call.1} parent=11 // pred_check_branch
          %258 = sbr.rel (%p256) target = $region32
        $region31: #{tpu_custom_call.1} parent=11 // pred_region
          _
        $region32: #{tpu_custom_call.1} parent=11 // pred_fallthru
          _
        // Predicated region
        $region33: #{tpu_custom_call.1} parent=11 // pred_check
          %p259 = pneg %p170
        $region34: #{tpu_custom_call.1} parent=11 // pred_check_branch
          %261 = sbr.rel (%p259) target = $region36
        $region35: #{tpu_custom_call.1} parent=11 // pred_region
          _
        $region36: #{tpu_custom_call.1} parent=11 // pred_fallthru
          _
      $region12: #{tpu_custom_call.1} parent=5 // pred_fallthru
        _
      %p262 = scmp.lt.s32.totalorder %s18, 2
      // Predicated region
      $region37: #{tpu_custom_call.1} parent=5 // pred_check
        %p263 = pneg %p262
      $region38: #{tpu_custom_call.1} parent=5 // pred_check_branch
        %265 = sbr.rel (%p263) target = $region40
      $region39: #{tpu_custom_call.1} parent=5 // pred_region
        // Predicated region
        $region41: #{tpu_custom_call.1} parent=39 // pred_check
          %p266 = pneg %p38
        $region42: #{tpu_custom_call.1} parent=39 // pred_check_branch
          %268 = sbr.rel (%p266) target = $region44
        $region43: #{tpu_custom_call.1} parent=39 // pred_region
          %p269 = scmp.lt.s32.totalorder %s18, 1
          %s270 = scalar_select %p269, %s18, 1
          %s271 = smul.addr %s270, 8
          %s272 = scalar_lea.vmem %s0, %s271
        $region44: #{tpu_custom_call.1} parent=39 // pred_fallthru
          _
      $region40: #{tpu_custom_call.1} parent=5 // pred_fallthru
        _
      %p273 = scmp.le.s32.totalorder 1, %s18
      %p274 = scmp.lt.s32.totalorder %s18, 3
      %p275 = pnand %p273, %p274
      %p276 = pneg %p275
      // Predicated region
      $region45: #{tpu_custom_call.1} parent=5 // pred_check
        _
      $region46: #{tpu_custom_call.1} parent=5 // pred_check_branch
        %278 = sbr.rel (%p275) target = $region48
      $region47: #{tpu_custom_call.1} parent=5 // pred_region
        %s279 = ssub.s32 %s18, 1
        // Predicated region
        $region49: #{tpu_custom_call.1} parent=47 // pred_check
          %p280 = pneg %p86
        $region50: #{tpu_custom_call.1} parent=47 // pred_check_branch
          %282 = sbr.rel (%p280) target = $region52
        $region51: #{tpu_custom_call.1} parent=47 // pred_region
          %284 = dma.done [#allocation3], 1024
        $region52: #{tpu_custom_call.1} parent=47 // pred_fallthru
          _
        // Predicated region
        $region53: #{tpu_custom_call.1} parent=47 // pred_check
          %p285 = pneg %p107
        $region54: #{tpu_custom_call.1} parent=47 // pred_check_branch
          %287 = sbr.rel (%p285) target = $region56
        $region55: #{tpu_custom_call.1} parent=47 // pred_region
          %289 = dma.done [#allocation6], 1024
        $region56: #{tpu_custom_call.1} parent=47 // pred_fallthru
          _
        // Predicated region
        $region57: #{tpu_custom_call.1} parent=47 // pred_check
          %p290 = pneg %p128
        $region58: #{tpu_custom_call.1} parent=47 // pred_check_branch
          %292 = sbr.rel (%p290) target = $region60
        $region59: #{tpu_custom_call.1} parent=47 // pred_region
          %294 = dma.done [#allocation6], 1024
        $region60: #{tpu_custom_call.1} parent=47 // pred_fallthru
          _
        %p295 = scmp.lt.s32.totalorder %s23, 1
        %s296 = scalar_select %p295, %s23, 1
        %s297 = smul.addr %s296, 8
        %s298 = scalar_lea.vmem %s0, %s297
        %p299 = pneg %p44
        %p300 = pneg %p41
        %p301 = pneg %p65
        %p302 = pneg %p62
        %p303 = pneg %p86
        %p304 = pneg %p83
        %p305 = pneg %p107
        %p306 = pneg %p104
        %p307 = pneg %p128
        %p308 = pneg %p125
        %p309 = pneg %p149
        %p310 = pneg %p146
        %p311 = pneg %p170
        %p312 = pneg %p167
        %p313 = pneg %p196
        %p314 = pneg %p193
        %s315 = sand.u32 %s183, 1
        %s316 = scalar_lea.sflag [#allocation4], %s315
        %s317 = sand.u32 %s183, 1
        %s318 = smul.addr %s317, 8
        %s319 = scalar_lea.vmem [#allocation8], %s318
        %p320 = scmp.lt.s32.totalorder %s23, 1
        %s321 = scalar_select %p320, %s23, 1
        %s322 = smul.addr %s321, 8
        %s323 = scalar_lea.vmem %s0, %s322
        %v325 = vld [vmem:[%s323] sm:$0xff]
        %v326 = vld [vmem:[%s5] sm:$0x1]
        %v327 = vld [vmem:[%s5 + $0x1] sm:$0x1]
        %v328 = vld [vmem:[%s5 + $0x2] sm:$0x1]
        %v329 = vpack.c.bf16 %v325, %v325
        %v330 = vld [vmem:[%s1] sm:$0xf]
        %v331 = vperm.slane %v326, 0
        %vm332 = vcmask 64512
        %v334 = vsel %vm332, %v329, 0
        %vm336 = vcmask 1043456
        %v338 = vsel %vm336, %v330, 0
        %340 = vmatpush.bf16.msra.mxu0 0
        %341 = vmatpush.bf16.msra.mxu0 0
        %342 = vmatpush.bf16.msra.mxu0 0
        %343 = vmatpush.bf16.msra.mxu0 0
        %344 = vmatpush.bf16.msra.mxu0 0
        %345 = vmatpush.bf16.msra.mxu0 0
        %346 = vmatpush.bf16.msra.mxu0 0
        %347 = vmatpush.bf16.msra.mxu0 %v338
        %348 = vmatmul.bf16.gmra.mxu0 %v334
        %v349 = vpop.f32.mrf.mxu0
        %v350 = vadd.f32 %v331, %v349
        %v351 = vpop.f32.mrf.mxu0
        %352 = vdwg.mxu0
        %353 = vadd.xlane.f32.xlu0 %v350
        %v354 = vpop.xlane.xlu0 %353
        %v355 = vrcp.pop 128.0
        %v356 = vmul.f32 128.0, %v355
        %v357 = vsub.f32 1.0, %v356
        %v358 = vmul.f32 %v355, %v357
        %v359 = vadd.f32 %v355, %v358
        %vm360 = vweird.f32 %v355
        %v361 = vsel %vm360, %v355, %v359
        %v362 = vmul.f32 %v354, %v361
        %v363 = vsub.f32 %v350, %v362
        %v364 = vmul.f32 %v363, %v363
        %365 = vadd.xlane.f32.xlu0 %v364
        %v366 = vpop.xlane.xlu0 %365
        %v367 = vmul.f32 %v366, %v361
        %v368 = vadd.f32 %v367, 1e-05
        %v369 = vrsqrt.pop %v368
        %v370 = vmul.f32 %v369, %v368
        %v371 = vmul.f32 %v370, %v369
        %v372 = vmul.f32 0.5, %v371
        %v373 = vsub.f32 1.5, %v372
        %v374 = vmul.f32 %v369, %v373
        %vm375 = vweird.f32 %v368
        %vm376 = vweird.f32 %v369
        %vm377 = vmor %vm375, %vm376
        %v378 = vsel %vm377, %v369, %v374
        %v379 = vmul.f32 %v363, %v378
        %v380 = vperm.slane %v327, 0
        %v381 = vmul.f32 %v379, %v380
        %v382 = vperm.slane %v328, 0
        %v383 = vadd.f32 %v381, %v382
        %v384 = vmul.f32 %v383, 0.01
        %v385 = vmax.f32 %v383, %v384
        %v386 = vld [vmem:[%s5 + $0x3] sm:$0x1]
        %v387 = vld [vmem:[%s5 + $0x4] sm:$0x1]
        %v388 = vld [vmem:[%s5 + $0x5] sm:$0x1]
        %v389 = vpack.c.bf16 %v385, %v385
        %v390 = vld [vmem:[#allocation2] sm:$0xf]
        %v391 = vld [vmem:[#allocation2 + $0x4] sm:$0xf]
        %v392 = vld [vmem:[#allocation2 + $0x8] sm:$0xf]
        %v393 = vld [vmem:[#allocation2 + $0xc] sm:$0xf]
        %v394 = vld [vmem:[#allocation2 + $0x10] sm:$0xf]
        %v395 = vld [vmem:[#allocation2 + $0x14] sm:$0xf]
        %v396 = vld [vmem:[#allocation2 + $0x18] sm:$0xf]
        %v397 = vld [vmem:[#allocation2 + $0x1c] sm:$0xf]
        %v398 = vld [vmem:[#allocation2 + $0x20] sm:$0xf]
        %v399 = vld [vmem:[#allocation2 + $0x24] sm:$0xf]
        %v400 = vld [vmem:[#allocation2 + $0x28] sm:$0xf]
        %v401 = vld [vmem:[#allocation2 + $0x2c] sm:$0xf]
        %v402 = vld [vmem:[#allocation2 + $0x30] sm:$0xf]
        %v403 = vld [vmem:[#allocation2 + $0x34] sm:$0xf]
        %v404 = vld [vmem:[#allocation2 + $0x38] sm:$0xf]
        %v405 = vld [vmem:[#allocation2 + $0x3c] sm:$0xf]
        %v406 = vperm.slane %v386, 0
        %v423 = vunpack.c.l.b16 %v390
        %v424 = vunpack.c.l.b16 %v391
        %v425 = vunpack.c.l.b16 %v392
        %v426 = vunpack.c.l.b16 %v393
        %v427 = vunpack.c.l.b16 %v394
        %v428 = vunpack.c.l.b16 %v395
        %v429 = vunpack.c.l.b16 %v396
        %v430 = vunpack.c.l.b16 %v397
        %v431 = vunpack.c.l.b16 %v398
        %v432 = vunpack.c.l.b16 %v399
        %v433 = vunpack.c.l.b16 %v400
        %v434 = vunpack.c.l.b16 %v401
        %v435 = vunpack.c.l.b16 %v402
        %v436 = vunpack.c.l.b16 %v403
        %v437 = vunpack.c.l.b16 %v404
        %v438 = vunpack.c.l.b16 %v405
        %v439 = vpack.c.b16 %v424, %v423
        %v440 = vpack.c.b16 %v426, %v425
        %v441 = vpack.c.b16 %v428, %v427
        %v442 = vpack.c.b16 %v430, %v429
        %v443 = vpack.c.b16 %v432, %v431
        %v444 = vpack.c.b16 %v434, %v433
        %v445 = vpack.c.b16 %v436, %v435
        %v446 = vpack.c.b16 %v438, %v437
        %455 = vmatpush.bf16.msra.mxu0 %v446
        %456 = vmatpush.bf16.msra.mxu0 %v445
        %457 = vmatpush.bf16.msra.mxu0 %v444
        %458 = vmatpush.bf16.msra.mxu0 %v443
        %459 = vmatpush.bf16.msra.mxu0 %v442
        %460 = vmatpush.bf16.msra.mxu0 %v441
        %461 = vmatpush.bf16.msra.mxu0 %v440
        %462 = vmatpush.bf16.msra.mxu0 %v439
        %463 = vmatmul.bf16.gmra.mxu0 %v389
        %v464 = vpop.f32.mrf.mxu0
        %v465 = vadd.f32 %v406, %v464
        %v466 = vpop.f32.mrf.mxu0
        %467 = vdwg.mxu0
        %468 = vadd.xlane.f32.xlu0 %v465
        %v469 = vpop.xlane.xlu0 %468
        %v470 = vmul.f32 %v469, %v361
        %v471 = vsub.f32 %v465, %v470
        %v472 = vmul.f32 %v471, %v471
        %473 = vadd.xlane.f32.xlu0 %v472
        %v474 = vpop.xlane.xlu0 %473
        %v475 = vmul.f32 %v474, %v361
        %v476 = vadd.f32 %v475, 1e-05
        %v477 = vrsqrt.pop %v476
        %v478 = vmul.f32 %v477, %v476
        %v479 = vmul.f32 %v478, %v477
        %v480 = vmul.f32 0.5, %v479
        %v481 = vsub.f32 1.5, %v480
        %v482 = vmul.f32 %v477, %v481
        %vm483 = vweird.f32 %v476
        %vm484 = vweird.f32 %v477
        %vm485 = vmor %vm483, %vm484
        %v486 = vsel %vm485, %v477, %v482
        %v487 = vmul.f32 %v471, %v486
        %v488 = vperm.slane %v387, 0
        %v489 = vmul.f32 %v487, %v488
        %v490 = vperm.slane %v388, 0
        %v491 = vadd.f32 %v489, %v490
        %v492 = vmul.f32 %v491, 0.01
        %v493 = vmax.f32 %v491, %v492
        %v494 = vld [vmem:[%s5 + $0x6] sm:$0x1]
        %v495 = vld [vmem:[%s5 + $0x7] sm:$0x1]
        %v496 = vld [vmem:[%s5 + $0x8] sm:$0x1]
        %v497 = vpack.c.bf16 %v493, %v493
        %v498 = vld [vmem:[#allocation5] sm:$0xf]
        %v499 = vld [vmem:[#allocation5 + $0x4] sm:$0xf]
        %v500 = vld [vmem:[#allocation5 + $0x8] sm:$0xf]
        %v501 = vld [vmem:[#allocation5 + $0xc] sm:$0xf]
        %v502 = vld [vmem:[#allocation5 + $0x10] sm:$0xf]
        %v503 = vld [vmem:[#allocation5 + $0x14] sm:$0xf]
        %v504 = vld [vmem:[#allocation5 + $0x18] sm:$0xf]
        %v505 = vld [vmem:[#allocation5 + $0x1c] sm:$0xf]
        %v506 = vld [vmem:[#allocation5 + $0x20] sm:$0xf]
        %v507 = vld [vmem:[#allocation5 + $0x24] sm:$0xf]
        %v508 = vld [vmem:[#allocation5 + $0x28] sm:$0xf]
        %v509 = vld [vmem:[#allocation5 + $0x2c] sm:$0xf]
        %v510 = vld [vmem:[#allocation5 + $0x30] sm:$0xf]
        %v511 = vld [vmem:[#allocation5 + $0x34] sm:$0xf]
        %v512 = vld [vmem:[#allocation5 + $0x38] sm:$0xf]
        %v513 = vld [vmem:[#allocation5 + $0x3c] sm:$0xf]
        %v514 = vperm.slane %v494, 0
        %v531 = vunpack.c.l.b16 %v498
        %v532 = vunpack.c.l.b16 %v499
        %v533 = vunpack.c.l.b16 %v500
        %v534 = vunpack.c.l.b16 %v501
        %v535 = vunpack.c.l.b16 %v502
        %v536 = vunpack.c.l.b16 %v503
        %v537 = vunpack.c.l.b16 %v504
        %v538 = vunpack.c.l.b16 %v505
        %v539 = vunpack.c.l.b16 %v506
        %v540 = vunpack.c.l.b16 %v507
        %v541 = vunpack.c.l.b16 %v508
        %v542 = vunpack.c.l.b16 %v509
        %v543 = vunpack.c.l.b16 %v510
        %v544 = vunpack.c.l.b16 %v511
        %v545 = vunpack.c.l.b16 %v512
        %v546 = vunpack.c.l.b16 %v513
        %v547 = vpack.c.b16 %v532, %v531
        %v548 = vpack.c.b16 %v534, %v533
        %v549 = vpack.c.b16 %v536, %v535
        %v550 = vpack.c.b16 %v538, %v537
        %v551 = vpack.c.b16 %v540, %v539
        %v552 = vpack.c.b16 %v542, %v541
        %v553 = vpack.c.b16 %v544, %v543
        %v554 = vpack.c.b16 %v546, %v545
        %563 = vmatpush.bf16.msra.mxu0 %v554
        %564 = vmatpush.bf16.msra.mxu0 %v553
        %565 = vmatpush.bf16.msra.mxu0 %v552
        %566 = vmatpush.bf16.msra.mxu0 %v551
        %567 = vmatpush.bf16.msra.mxu0 %v550
        %568 = vmatpush.bf16.msra.mxu0 %v549
        %569 = vmatpush.bf16.msra.mxu0 %v548
        %570 = vmatpush.bf16.msra.mxu0 %v547
        %571 = vmatmul.bf16.gmra.mxu0 %v497
        %v572 = vpop.f32.mrf.mxu0
        %v573 = vadd.f32 %v514, %v572
        %v574 = vpop.f32.mrf.mxu0
        %575 = vdwg.mxu0
        %576 = vadd.xlane.f32.xlu0 %v573
        %v577 = vpop.xlane.xlu0 %576
        %v578 = vmul.f32 %v577, %v361
        %v579 = vsub.f32 %v573, %v578
        %v580 = vmul.f32 %v579, %v579
        %581 = vadd.xlane.f32.xlu0 %v580
        %v582 = vpop.xlane.xlu0 %581
        %v583 = vmul.f32 %v582, %v361
        %v584 = vadd.f32 %v583, 1e-05
        %v585 = vrsqrt.pop %v584
        %v586 = vmul.f32 %v585, %v584
        %v587 = vmul.f32 %v586, %v585
        %v588 = vmul.f32 0.5, %v587
        %v589 = vsub.f32 1.5, %v588
        %v590 = vmul.f32 %v585, %v589
        %vm591 = vweird.f32 %v584
        %vm592 = vweird.f32 %v585
        %vm593 = vmor %vm591, %vm592
        %v594 = vsel %vm593, %v585, %v590
        %v595 = vmul.f32 %v579, %v594
        %v596 = vperm.slane %v495, 0
        %v597 = vmul.f32 %v595, %v596
        %v598 = vperm.slane %v496, 0
        %v599 = vadd.f32 %v597, %v598
        %v600 = vmul.f32 %v599, 0.01
        %v601 = vmax.f32 %v599, %v600
        %v602 = vpack.c.bf16 %v601, %v601
        %v603 = vld [vmem:[#allocation7] sm:$0xf]
        %v604 = vld [vmem:[#allocation7 + $0x4] sm:$0xf]
        %v605 = vld [vmem:[#allocation7 + $0x8] sm:$0xf]
        %v606 = vld [vmem:[#allocation7 + $0xc] sm:$0xf]
        %v607 = vld [vmem:[#allocation7 + $0x10] sm:$0xf]
        %v608 = vld [vmem:[#allocation7 + $0x14] sm:$0xf]
        %v609 = vld [vmem:[#allocation7 + $0x18] sm:$0xf]
        %v610 = vld [vmem:[#allocation7 + $0x1c] sm:$0xf]
        %v611 = vld [vmem:[#allocation7 + $0x20] sm:$0xf]
        %v612 = vld [vmem:[#allocation7 + $0x24] sm:$0xf]
        %v613 = vld [vmem:[#allocation7 + $0x28] sm:$0xf]
        %v614 = vld [vmem:[#allocation7 + $0x2c] sm:$0xf]
        %v615 = vld [vmem:[#allocation7 + $0x30] sm:$0xf]
        %v616 = vld [vmem:[#allocation7 + $0x34] sm:$0xf]
        %v617 = vld [vmem:[#allocation7 + $0x38] sm:$0xf]
        %v618 = vld [vmem:[#allocation7 + $0x3c] sm:$0xf]
        %v619 = vld [vmem:[%s6] sm:$0x1]
        %v621 = vperm.slane %v619, 0
        %v639 = vunpack.c.l.b16 %v603
        %v640 = vunpack.c.l.b16 %v604
        %v641 = vunpack.c.l.b16 %v605
        %v642 = vunpack.c.l.b16 %v606
        %v643 = vunpack.c.l.b16 %v607
        %v644 = vunpack.c.l.b16 %v608
        %v645 = vunpack.c.l.b16 %v609
        %v646 = vunpack.c.l.b16 %v610
        %v647 = vunpack.c.l.b16 %v611
        %v648 = vunpack.c.l.b16 %v612
        %v649 = vunpack.c.l.b16 %v613
        %v650 = vunpack.c.l.b16 %v614
        %v651 = vunpack.c.l.b16 %v615
        %v652 = vunpack.c.l.b16 %v616
        %v653 = vunpack.c.l.b16 %v617
        %v654 = vunpack.c.l.b16 %v618
        %v655 = vpack.c.b16 %v640, %v639
        %v656 = vpack.c.b16 %v642, %v641
        %v657 = vpack.c.b16 %v644, %v643
        %v658 = vpack.c.b16 %v646, %v645
        %v659 = vpack.c.b16 %v648, %v647
        %v660 = vpack.c.b16 %v650, %v649
        %v661 = vpack.c.b16 %v652, %v651
        %v662 = vpack.c.b16 %v654, %v653
        %671 = vmatpush.bf16.msra.mxu0 %v662
        %672 = vmatpush.bf16.msra.mxu0 %v661
        %673 = vmatpush.bf16.msra.mxu0 %v660
        %674 = vmatpush.bf16.msra.mxu0 %v659
        %675 = vmatpush.bf16.msra.mxu0 %v658
        %676 = vmatpush.bf16.msra.mxu0 %v657
        %677 = vmatpush.bf16.msra.mxu0 %v656
        %678 = vmatpush.bf16.msra.mxu0 %v655
        %679 = vmatmul.bf16.gmra.mxu0 %v602
        %v680 = vpop.f32.mrf.mxu0
        %v681 = vadd.f32 %v621, %v680
        %v682 = vpop.f32.mrf.mxu0
        %683 = vdwg.mxu0
        %v684 = vtanh.pop %v681
        %685 = vst [vmem:[%s319] sm:$0xff] %v684
        %s686 = sand.u32 %s183, 1
        %s687 = scalar_lea.sflag [#allocation4], %s686
        %s688 = sand.u32 %s183, 1
        %s689 = smul.addr %s688, 8
        %s690 = scalar_lea.vmem [#allocation8], %s689
        // Predicated region
        $region61: #{tpu_custom_call.1} parent=47 // pred_check
          %p691 = pneg %p193
        $region62: #{tpu_custom_call.1} parent=47 // pred_check_branch
          %693 = sbr.rel (%p691) target = $region64
        $region63: #{tpu_custom_call.1} parent=47 // pred_region
          %695 = vsyncadd %s687, 0
          %s696 = smul.addr %s23, 8
          %s697 = scalar_lea.hbm %s7, %s696
          %s699 = sshll.u32 %s690, 4
          %s700 = int_to_ptr.vmem [resolvable:$true] %s699
          %s701 = sshll.u32 %s697, 4
          %s702 = int_to_ptr.hbm [resolvable:$true] %s701
          %704 = dma.vmem_to_hbm [thread:$0]  %s700, 128, %s702, %s687
        $region64: #{tpu_custom_call.1} parent=47 // pred_fallthru
          _
      $region48: #{tpu_custom_call.1} parent=5 // pred_fallthru
        _
      %p705 = scmp.le.s32.totalorder 2, %s18
      // Predicated region
      $region65: #{tpu_custom_call.1} parent=5 // pred_check
        %p706 = pneg %p705
      $region66: #{tpu_custom_call.1} parent=5 // pred_check_branch
        %708 = sbr.rel (%p706) target = $region68
      $region67: #{tpu_custom_call.1} parent=5 // pred_region
        %s709 = ssub.s32 %s18, 2
        // Predicated region
        $region69: #{tpu_custom_call.1} parent=67 // pred_check
          %p710 = pneg %p199
        $region70: #{tpu_custom_call.1} parent=67 // pred_check_branch
          %712 = sbr.rel (%p710) target = $region72
        $region71: #{tpu_custom_call.1} parent=67 // pred_region
          %s713 = sand.u32 %s184, 1
          %s714 = scalar_lea.sflag [#allocation4], %s713
          %s715 = sand.u32 %s184, 1
          %s716 = smul.addr %s715, 8
          %s717 = scalar_lea.vmem [#allocation8], %s716
          %719 = dma.done %s714, 128
        $region72: #{tpu_custom_call.1} parent=67 // pred_fallthru
          _
      $region68: #{tpu_custom_call.1} parent=5 // pred_fallthru
        _
    $region6: #{tpu_custom_call.1} parent=1 // loop_footer
      %s22 = sadd.s32 1, %s18
    $region7: #{tpu_custom_call.1} parent=1 // loop_footer_branch
      %17 = sbr.rel target = $region3
    $region8: #{tpu_custom_call.1} parent=1 // loop_exit
      _
    %720 = vsyncpa [#allocation3], 1
    %s721 = scalar_lea.sflag [#allocation3], 1
    %722 = vsyncpa %s721, 1
    %723 = vsyncpa [#allocation6], 1
    %724 = vsyncpa [#allocation4], 1
    %s725 = scalar_lea.sflag [#allocation4], 1
    %726 = vsyncpa %s725, 1

</llo_original>
